<compile_context>
chip_gen: v7x
topology: tpu7x:2x2x1
jax: 0.10.0
libtpu: 0.0.40
codegen_flags: <defaults>
</compile_context>

<pallas_src>
import math

import jax
import jax.numpy as jnp
from jax.experimental import pallas as pl
from jax.experimental.pallas import tpu as pltpu


# ----------------------------------------------------------------------------
# Variant 1: direct HBM -> HBM DMA (no VMEM round trip).
# ----------------------------------------------------------------------------
def _hbm_copy_kernel(x_hbm, o_hbm, sem):
    # TODO(synk): reference forward body is `pass`; no compute exists to port.
    cp = pltpu.make_async_copy(x_hbm, o_hbm, sem)
    cp.start()
    cp.wait()


def _lane_dense_2d(total: int):
    """Pick a lane-dense 2-D view (rows, lane) of `total` elements, if possible."""
    for lane in (1024, 512, 256, 128):
        if total % lane == 0:
            return total // lane, lane
    return None


def spatial_transformer_identity_dma(x: jax.Array) -> jax.Array:
    """Identity pass-through as one DMA-engine transfer at HBM bandwidth."""
    orig_shape = x.shape
    total = math.prod(orig_shape)

    # Contiguous reshape to a lane-dense slab is free (metadata only) and keeps
    # the DMA descriptor wide; fall back to the original shape otherwise.
    view = _lane_dense_2d(total)
    x_in = x.reshape(view) if view is not None else x

    out = pl.pallas_call(
        _hbm_copy_kernel,
        out_shape=jax.ShapeDtypeStruct(x_in.shape, x_in.dtype),
        in_specs=[pl.BlockSpec(memory_space=pl.ANY)],
        out_specs=pl.BlockSpec(memory_space=pl.ANY),
        scratch_shapes=[pltpu.SemaphoreType.DMA],
        compiler_params=pltpu.CompilerParams(
            # Tiny footprint; cap well under v7x's 64 MiB physical VMEM.
            vmem_limit_bytes=16 * 1024 * 1024,
        ),
    )(x_in)

    return out.reshape(orig_shape)


# ----------------------------------------------------------------------------
# Variant 2: pipelined, lane-dense tiled copy (demonstrates the BlockSpec path
# the real SpatialTransformer compute would use).
# ----------------------------------------------------------------------------
_LANE = 512      # last dim: large multiple of 128 -> unmasked vst, lane-dense
_TM_MAX = 512    # rows per tile: 512x512 f32 = 1 MiB/tile -> 4 MiB resident


def _tiled_copy_kernel(x_ref, o_ref):
    # TODO(synk): reference forward body is `pass`; no compute exists to port.
    o_ref[...] = x_ref[...]


def spatial_transformer_identity_tiled(x: jax.Array) -> jax.Array:
    """Identity pass-through staged through VMEM with a pipelined 1-D grid."""
    orig_shape = x.shape
    total = math.prod(orig_shape)

    flat = x.reshape(-1)

    # Rows needed for a lane-dense (rows, _LANE) slab.
    rows = -(-total // _LANE)  # cdiv
    if rows >= _TM_MAX:
        tm = _TM_MAX
        rows_p = -(-rows // tm) * tm          # pad rows to a multiple of the tile
    else:
        rows_p = max(8, -(-rows // 8) * 8)    # keep sublane dim a multiple of 8
        tm = rows_p                           # single full-height tile

    pad = rows_p * _LANE - total
    if pad:
        flat = jnp.pad(flat, (0, pad))
    x2d = flat.reshape(rows_p, _LANE)

    grid = (rows_p // tm,)
    out2d = pl.pallas_call(
        _tiled_copy_kernel,
        out_shape=jax.ShapeDtypeStruct((rows_p, _LANE), x2d.dtype),
        grid=grid,
        in_specs=[pl.BlockSpec((tm, _LANE), lambda i: (i, 0))],
        out_specs=pl.BlockSpec((tm, _LANE), lambda i: (i, 0)),
        compiler_params=pltpu.CompilerParams(
            # "parallel": shard the row-grid across v7x's 2 TensorCores
            # (harmless no-op on single-TC v5e/v6e).
            dimension_semantics=("parallel",),
            # Explicit sizing: 2x(in tile) + 2x(out tile) = 4 MiB << 64 MiB.
            vmem_limit_bytes=64 * 1024 * 1024,
        ),
    )(x2d)

    return out2d.reshape(-1)[:total].reshape(orig_shape)


# ----------------------------------------------------------------------------
# Module wrapper — mirrors the PyTorch stub exactly.
# ----------------------------------------------------------------------------
class SpatialTransformer:
    """JAX/Pallas mirror of the PyTorch `SpatialTransformer` stub."""

    def __init__(self, *args, **kwargs):
        # Reference __init__ defines no parameters.
        pass

    def forward(self, *args, **kwargs):
        # Reference forward is `pass` -> returns None. Semantics preserved.
        return None

    __call__ = forward


if __name__ == "__main__":
    key = jax.random.PRNGKey(0)
    x = jax.random.normal(key, (2, 4, 16, 16), dtype=jnp.float32)

    # Variant 1: HBM -> HBM DMA pass-through.
    y_dma = jax.block_until_ready(spatial_transformer_identity_dma(x))
    assert y_dma.shape == x.shape and y_dma.dtype == x.dtype
    assert bool(jnp.array_equal(y_dma, x)), "DMA pass-through mismatch"

    # Variant 2: lane-dense tiled VMEM copy pass-through.
    y_tiled = jax.block_until_ready(spatial_transformer_identity_tiled(x))
    assert y_tiled.shape == x.shape and y_tiled.dtype == x.dtype
    assert bool(jnp.array_equal(y_tiled, x)), "tiled pass-through mismatch"

    # Exact module semantics: forward(...) returns None.
    model = SpatialTransformer()
    assert model.forward(x) is None

    print("KERNEL_OK")
</pallas_src>

<mosaic_0001>
module attributes {stable_mosaic.version = 11 : i64} {
  func.func @_hbm_copy_kernel(%arg0: memref<2x1024xf32, #tpu.memory_space<any>>, %arg1: memref<2x1024xf32, #tpu.memory_space<any>>, %arg2: memref<!tpu.dma_semaphore, #tpu.memory_space<semaphore_mem>>) attributes {dimension_semantics = [], scalar_prefetch = 0 : i64, scratch_operands = 1 : i64, tpu.core_type = #tpu.core_type<tc>} {
    tpu.enqueue_dma source(%arg0 : memref<2x1024xf32, #tpu.memory_space<any>>) target(%arg1 : memref<2x1024xf32, #tpu.memory_space<any>>) target_semaphore(%arg2 : memref<!tpu.dma_semaphore, #tpu.memory_space<semaphore_mem>>)
    tpu.wait_dma2 semaphore(%arg2 : memref<!tpu.dma_semaphore, #tpu.memory_space<semaphore_mem>>) src(%arg0 : memref<2x1024xf32, #tpu.memory_space<any>>) dst(%arg1 : memref<2x1024xf32, #tpu.memory_space<any>>)
    return
  }
}

</mosaic_0001>

<llo_original>
// kernel: tpu_custom_call.1
$region0: #{tpu_custom_call.1}
  #allocation0 [shape = 'u32[]', space=smem, size = 0x4, offset = 0x4, fixed_abs, tag = 'smem constant byte address 0x4 - core index']
  #allocation1 [shape = 'u32[144,128]{1,0:T(1,128)}', space=vmem, size = 0x12000, scoped, tag = 'internal scratch']
  #allocation2 [shape = 's32[1]{0}', space=sflag, size = 0x4, scoped, tag = 'scratch operand']
  #allocation3 [shape = 's32[]', space=sflag, size = 0x4, offset = 0, fixed_abs, tag = 'sflag constant byte address 0x0 - dummy sync flag']
  #allocation4 [shape = 'u32[0]{0}', space=smem, size = 0, offset = 0, fixed_abs, tag = 'smem constant byte address 0x0 - null']
  %s0 = inlined_call_operand.hbm [shape: f32[2,1024], index: 0, kind: input, shape index: {}]
  %s1 = inlined_call_operand.hbm [shape: f32[2,1024], index: 1, kind: output, shape index: {}]
  %s2 = sld [smem:[#allocation0]]
  $region2: #{tpu_custom_call.1} parent=0
    _
  %s4 = ssub.s32 1, %s2
  %s5 = scalar_select 0, %s4, %s2
  %s7 = sshll.u32 1, 14
  %s8 = sxor.u32 4294967295, %s7
  %s11 = sshll.u32 3, 24
  %s12 = sxor.u32 4294967295, %s11
  %s13 = sand.u32 0, %s12
  %s15 = sor.u32 %s13, 0
  %18 = dma.general %s0, 256, %s1, [#allocation2], [#allocation3], [#allocation4], %s15, 0
  %s19 = smul.u32 2, 1
  %s20 = smul.u32 %s19, 8
  %s21 = sshll.u32 %s20, 4
  %22 = dma.done [#allocation2], %s21
  %23 = vsyncmov [#allocation2]
  %s24 = vpop.sfrf %23
  %p25 = scmp.eq.s32.totalorder %s24, 0
  %p26 = pneg %p25
  %28 = shalt.err (%p26)

</llo_original>
